<compile_context>
chip_gen: v7x
topology: tpu7x:2x2x1
jax: 0.10.0
libtpu: 0.0.40
codegen_flags: <defaults>
</compile_context>

<pallas_src>
import functools

import jax
import jax.numpy as jnp
from jax.experimental import pallas as pl
from jax.experimental.pallas import tpu as pltpu


_INV_SQRT2 = 0.7071067811865476


def _gelu_exact(x):
    # Matches torch.nn.functional.gelu default (erf formulation).
    # TODO(synk): optionally switch to tanh-approx GELU (EUP slot, co-issues for
    # free) when bit-matching torch's erf GELU is not a hard requirement.
    return 0.5 * x * (1.0 + jax.lax.erf(x * _INV_SQRT2))


def _round_up(x, m):
    return ((x + m - 1) // m) * m


def residual_ffn_kernel(x_ref, w1_ref, b1_ref, w2_ref, b2_ref,
                        gamma_ref, beta_ref, o_ref, acc_ref, *, eps, d_true, n_pad):
    k = pl.program_id(1)

    @pl.when(k == 0)
    def _():
        acc_ref[...] = jnp.zeros_like(acc_ref)

    # Native-dtype operands straight into the MXU, f32 accumulation.
    x_nat = x_ref[...]                                            # (tm, Dp)

    # First matmul: full d_model contraction, this d_ff chunk's output columns.
    h = jnp.dot(x_nat, w1_ref[...], preferred_element_type=jnp.float32)
    h = _gelu_exact(h + b1_ref[...].astype(jnp.float32))          # (tm, tk) f32

    # Second matmul: accumulate the d_ff-chunk contraction into f32 scratch.
    acc_ref[...] += jnp.dot(h.astype(w2_ref.dtype), w2_ref[...],
                            preferred_element_type=jnp.float32)

    @pl.when(k == pl.num_programs(1) - 1)
    def _():
        out = acc_ref[...] + b2_ref[...].astype(jnp.float32)      # (tm, Dp) f32

        # Residual + LayerNorm (postnorm) in f32 over the true d_model columns.
        # NOTE: padded feature columns of x, of W2's output and of b2 are all
        # zero-padded in the wrapper, so padded columns of r are exactly 0 and
        # the mean below is unbiased. Do not change the padding without
        # revisiting this.
        r = x_nat.astype(jnp.float32) + out
        inv_d = 1.0 / float(d_true)
        mean = jnp.sum(r, axis=-1, keepdims=True) * inv_d
        c = r - mean
        # Analytic correction for the n_pad zero columns (each has c = -mean):
        #   sum(c^2 over Dp cols) = sum(c^2 over true cols) + n_pad * mean^2
        ssq = jnp.sum(c * c, axis=-1, keepdims=True)
        var = (ssq - float(n_pad) * mean * mean) * inv_d
        inv = jax.lax.rsqrt(var + eps)
        y = c * inv * gamma_ref[...].astype(jnp.float32) \
            + beta_ref[...].astype(jnp.float32)
        o_ref[...] = y.astype(o_ref.dtype)


def _vmem_estimate(tm, Dp, tk, w_bytes, io_bytes):
    x_bufs = 2 * tm * Dp * io_bytes              # double-buffered input rows
    o_bufs = 2 * tm * Dp * io_bytes              # double-buffered output rows
    w_bufs = 2 * 2 * Dp * tk * w_bytes           # W1 + W2 chunks, double-buffered
    vec_bufs = 2 * (tk + 3 * Dp) * w_bytes * 8   # b1/b2/gamma/beta (sublane-padded)
    acc = tm * Dp * 4                            # f32 accumulator scratch
    h_tmp = 2 * tm * tk * 4                      # h + one f32 temporary
    fin_tmp = 4 * tm * Dp * 4                    # f32 temporaries in the finalize
    return x_bufs + o_bufs + w_bufs + vec_bufs + acc + h_tmp + fin_tmp


def _vmem_capacity_bytes():
    # Generation-aware capacity (v5e/v6e: 128 MiB, v7x: 64 MiB per TensorCore).
    try:
        info = pltpu.get_tpu_info()
        cap = getattr(info, "vmem_capacity_bytes", None)
        if cap:
            return int(cap)
    except Exception:
        pass
    return 64 * 1024 * 1024   # conservative (v7x) fallback


def residual_block_ffn(x, w1, b1, w2, b2, gamma, beta, *, eps=1e-5, tm=256):
    """ResidualBlock (FFN, prenorm=False): LayerNorm(x + fc2(gelu(fc1(x)))).

    x: (B, T, D). Weights stored pre-transposed: w1 (D, d_ff), w2 (d_ff, D).
    """
    B, T, D = x.shape
    d_ff = w1.shape[1]
    M = B * T

    # Lane-dense feature dims (multiples of 128).
    # TODO(synk): consider 256-alignment of features / row tiles on v6e+ MXUs.
    Dp = _round_up(D, 128)
    dffp = _round_up(d_ff, 128)

    w_bytes = jnp.dtype(w1.dtype).itemsize
    io_bytes = jnp.dtype(x.dtype).itemsize

    cap = _vmem_capacity_bytes()
    budget = cap * 3 // 4

    # --- Tile fit: row tile (multiple of 8, clamped to problem size), then the
    # largest 128-multiple d_ff chunk that fits the budget (direct solve; the
    # estimate is linear in tk).  Only shrink the row tile if even tk=128 fails.
    tm_eff = max(8, min(_round_up(tm, 8), _round_up(M, 8)))

    def max_fitting_tk(tm_rows):
        base = _vmem_estimate(tm_rows, Dp, 0, w_bytes, io_bytes)
        slope = _vmem_estimate(tm_rows, Dp, 128, w_bytes, io_bytes) - base
        if base + slope > budget:        # even a 128-wide chunk does not fit
            return None
        return min(dffp, ((budget - base) // slope) * 128)

    tk = max_fitting_tk(tm_eff)
    while tk is None and tm_eff > 8:
        tm_eff = max(8, tm_eff - 8)
        tk = max_fitting_tk(tm_eff)
    if tk is None:
        tk = 128   # last resort; rely on vmem_limit headroom below

    # Balance d_ff chunks across the k axis and pad d_ff to a chunk multiple
    # (padded W1 cols / W2 rows / b1 entries are zero => contribute nothing).
    if tk >= dffp:
        tk, kt = dffp, 1
    else:
        kt = -(-dffp // tk)
        tk = _round_up(-(-dffp // kt), 128)
    dffp_pad = kt * tk

    Mp = _round_up(M, tm_eff)
    n_row_tiles = Mp // tm_eff

    est = _vmem_estimate(tm_eff, Dp, tk, w_bytes, io_bytes)
    vmem_limit = int(min(cap * 9 // 10, max(est * 5 // 4, 32 * 1024 * 1024)))

    # Wrapper-side zero padding (rows to tile multiple, features to lane width).
    x2 = jnp.pad(x.reshape(M, D), ((0, Mp - M), (0, Dp - D)))
    w1p = jnp.pad(w1, ((0, Dp - D), (0, dffp_pad - d_ff)))
    w2p = jnp.pad(w2, ((0, dffp_pad - d_ff), (0, Dp - D)))
    b1p = jnp.pad(b1, (0, dffp_pad - d_ff)).reshape(1, dffp_pad)
    b2p = jnp.pad(b2, (0, Dp - D)).reshape(1, Dp)
    gammap = jnp.pad(gamma, (0, Dp - D)).reshape(1, Dp)
    betap = jnp.pad(beta, (0, Dp - D)).reshape(1, Dp)

    # Advisory cost for XLA scheduling around the custom call.
    weight_reads = 1 if kt == 1 else n_row_tiles
    cost = pl.CostEstimate(
        flops=4 * M * D * d_ff,
        transcendentals=M * d_ff,
        bytes_accessed=2 * M * D * io_bytes
        + weight_reads * 2 * Dp * dffp_pad * w_bytes,
    )

    out = pl.pallas_call(
        functools.partial(residual_ffn_kernel, eps=eps, d_true=D, n_pad=Dp - D),
        out_shape=jax.ShapeDtypeStruct((Mp, Dp), x.dtype),
        grid_spec=pltpu.PrefetchScalarGridSpec(
            num_scalar_prefetch=0,
            grid=(n_row_tiles, kt),
            in_specs=[
                pl.BlockSpec((tm_eff, Dp), lambda i, k: (i, 0)),   # x rows (k-invariant)
                pl.BlockSpec((Dp, tk), lambda i, k: (0, k)),       # W1 chunk
                pl.BlockSpec((1, tk), lambda i, k: (0, k)),        # b1 chunk
                pl.BlockSpec((tk, Dp), lambda i, k: (k, 0)),       # W2 chunk
                pl.BlockSpec((1, Dp), lambda i, k: (0, 0)),        # b2
                pl.BlockSpec((1, Dp), lambda i, k: (0, 0)),        # gamma
                pl.BlockSpec((1, Dp), lambda i, k: (0, 0)),        # beta
            ],
            out_specs=pl.BlockSpec((tm_eff, Dp), lambda i, k: (i, 0)),
            scratch_shapes=[pltpu.VMEM((tm_eff, Dp), jnp.float32)],
        ),
        compiler_params=pltpu.CompilerParams(
            dimension_semantics=("parallel", "arbitrary"),
            vmem_limit_bytes=vmem_limit),
        cost_estimate=cost,
    )(x2, w1p, b1p, w2p, b2p, gammap, betap)

    return out[:M, :D].reshape(B, T, D)


def _ref_forward(x, w1, b1, w2, b2, gamma, beta, eps=1e-5):
    h = _gelu_exact(x @ w1 + b1)
    out = h @ w2 + b2
    r = x + out
    mean = jnp.mean(r, axis=-1, keepdims=True)
    var = jnp.mean((r - mean) ** 2, axis=-1, keepdims=True)
    return (r - mean) * jax.lax.rsqrt(var + eps) * gamma + beta


if __name__ == "__main__":
    B, T, D, D_FF = 2, 8, 32, 64

    key = jax.random.PRNGKey(0)
    kx, k1, k2, k3, k4 = jax.random.split(key, 5)

    x = jax.random.normal(kx, (B, T, D), dtype=jnp.float32)

    # Deterministic parameter init (uniform like torch Linear default bounds).
    lim1 = 1.0 / jnp.sqrt(D)
    lim2 = 1.0 / jnp.sqrt(D_FF)
    w1 = jax.random.uniform(k1, (D, D_FF), jnp.float32, -lim1, lim1)   # fc1.weight^T
    b1 = jax.random.uniform(k2, (D_FF,), jnp.float32, -lim1, lim1)
    w2 = jax.random.uniform(k3, (D_FF, D), jnp.float32, -lim2, lim2)   # fc2.weight^T
    b2 = jax.random.uniform(k4, (D,), jnp.float32, -lim2, lim2)
    gamma = jnp.ones((D,), jnp.float32)    # nn.LayerNorm default affine init
    beta = jnp.zeros((D,), jnp.float32)

    y = residual_block_ffn(x, w1, b1, w2, b2, gamma, beta)
    y = jax.block_until_ready(y)

    y_ref = _ref_forward(x, w1, b1, w2, b2, gamma, beta)
    assert y.shape == (B, T, D)
    assert jnp.allclose(y, y_ref, atol=2e-5, rtol=2e-5)

    print("KERNEL_OK")
</pallas_src>

<mosaic_0001>
module attributes {stable_mosaic.version = 11 : i64} {
  func.func @residual_ffn_kernel(%arg0: i32, %arg1: i32, %arg2: memref<16x128xf32, #tpu.memory_space<vmem>>, %arg3: memref<128x128xf32, #tpu.memory_space<vmem>>, %arg4: memref<1x128xf32, #tpu.memory_space<vmem>>, %arg5: memref<128x128xf32, #tpu.memory_space<vmem>>, %arg6: memref<1x128xf32, #tpu.memory_space<vmem>>, %arg7: memref<1x128xf32, #tpu.memory_space<vmem>>, %arg8: memref<1x128xf32, #tpu.memory_space<vmem>>, %arg9: memref<16x128xf32, #tpu.memory_space<vmem>>, %arg10: memref<16x128xf32, #tpu.memory_space<vmem>>) attributes {dimension_semantics = [#tpu.dimension_semantics<parallel>, #tpu.dimension_semantics<arbitrary>], iteration_bounds = array<i64: 1, 1>, scalar_prefetch = 0 : i64, scratch_operands = 1 : i64, tpu.core_type = #tpu.core_type<tc>, window_params = [{transform_indices = @transform_0, window_bounds = array<i64: 16, 128>}, {transform_indices = @transform_1, window_bounds = array<i64: 128, 128>}, {transform_indices = @transform_2, window_bounds = array<i64: 1, 128>}, {transform_indices = @transform_3, window_bounds = array<i64: 128, 128>}, {pipeline_mode = #tpu.pipeline_mode<synchronous>, transform_indices = @transform_4, window_bounds = array<i64: 1, 128>}, {pipeline_mode = #tpu.pipeline_mode<synchronous>, transform_indices = @transform_5, window_bounds = array<i64: 1, 128>}, {pipeline_mode = #tpu.pipeline_mode<synchronous>, transform_indices = @transform_6, window_bounds = array<i64: 1, 128>}, {transform_indices = @transform_7, window_bounds = array<i64: 16, 128>}]} {
    %c0_i32 = arith.constant 0 : i32
    %0 = arith.cmpi eq, %arg1, %c0_i32 : i32
    %1 = arith.extui %0 : i1 to i32
    %c0_i32_0 = arith.constant 0 : i32
    %2 = arith.cmpi ne, %1, %c0_i32_0 : i32
    scf.if %2 {
      %cst_18 = arith.constant 0.000000e+00 : f32
      %25 = vector.broadcast %cst_18 : f32 to vector<16x128xf32>
      %c0_19 = arith.constant 0 : index
      %c0_20 = arith.constant 0 : index
      %26 = vector.load %arg10[%c0_19, %c0_20] : memref<16x128xf32, #tpu.memory_space<vmem>>, vector<16x128xf32>
      tpu.vector_store %arg10[%c0_19, %c0_20], %25 {strides = array<i32>} : memref<16x128xf32, #tpu.memory_space<vmem>>, vector<16x128xf32>,
    } else {
    }
    %c0 = arith.constant 0 : index
    %c0_1 = arith.constant 0 : index
    %3 = vector.load %arg2[%c0, %c0_1] : memref<16x128xf32, #tpu.memory_space<vmem>>, vector<16x128xf32>
    %c0_2 = arith.constant 0 : index
    %c0_3 = arith.constant 0 : index
    %4 = vector.load %arg3[%c0_2, %c0_3] : memref<128x128xf32, #tpu.memory_space<vmem>>, vector<128x128xf32>
    %cst = arith.constant dense<0.000000e+00> : vector<16x128xf32>
    %5 = tpu.matmul %3, %4, %cst {dimension_numbers = #tpu.dot_dimension_numbers<[1], [0], [0], [1], [0, 0, 1, 1], [], []>} : vector<16x128xf32>, vector<128x128xf32>, vector<16x128xf32> -> vector<16x128xf32>
    %c0_4 = arith.constant 0 : index
    %c0_5 = arith.constant 0 : index
    %6 = vector.load %arg4[%c0_4, %c0_5] : memref<1x128xf32, #tpu.memory_space<vmem>>, vector<1x128xf32>
    %7 = vector.broadcast %6 : vector<1x128xf32> to vector<16x128xf32>
    %8 = arith.addf %5, %7 : vector<16x128xf32>
    %cst_6 = arith.constant 5.000000e-01 : f32
    %9 = vector.broadcast %cst_6 : f32 to vector<16x128xf32>
    %10 = arith.mulf %9, %8 : vector<16x128xf32>
    %cst_7 = arith.constant 0.707106769 : f32
    %11 = vector.broadcast %cst_7 : f32 to vector<16x128xf32>
    %12 = arith.mulf %8, %11 : vector<16x128xf32>
    %13 = math.erf %12 : vector<16x128xf32>
    %cst_8 = arith.constant 1.000000e+00 : f32
    %14 = vector.broadcast %cst_8 : f32 to vector<16x128xf32>
    %15 = arith.addf %14, %13 : vector<16x128xf32>
    %16 = arith.mulf %10, %15 : vector<16x128xf32>
    %c0_9 = arith.constant 0 : index
    %c0_10 = arith.constant 0 : index
    %17 = vector.load %arg10[%c0_9, %c0_10] : memref<16x128xf32, #tpu.memory_space<vmem>>, vector<16x128xf32>
    %c0_11 = arith.constant 0 : index
    %c0_12 = arith.constant 0 : index
    %18 = vector.load %arg5[%c0_11, %c0_12] : memref<128x128xf32, #tpu.memory_space<vmem>>, vector<128x128xf32>
    %cst_13 = arith.constant dense<0.000000e+00> : vector<16x128xf32>
    %19 = tpu.matmul %16, %18, %cst_13 {dimension_numbers = #tpu.dot_dimension_numbers<[1], [0], [0], [1], [0, 0, 1, 1], [], []>} : vector<16x128xf32>, vector<128x128xf32>, vector<16x128xf32> -> vector<16x128xf32>
    %20 = arith.addf %17, %19 : vector<16x128xf32>
    %c0_14 = arith.constant 0 : index
    %c0_15 = arith.constant 0 : index
    %21 = vector.load %arg10[%c0_14, %c0_15] : memref<16x128xf32, #tpu.memory_space<vmem>>, vector<16x128xf32>
    tpu.vector_store %arg10[%c0_14, %c0_15], %20 {strides = array<i32>} : memref<16x128xf32, #tpu.memory_space<vmem>>, vector<16x128xf32>,
    %c0_i32_16 = arith.constant 0 : i32
    %22 = arith.cmpi eq, %arg1, %c0_i32_16 : i32
    %23 = arith.extui %22 : i1 to i32
    %c0_i32_17 = arith.constant 0 : i32
    %24 = arith.cmpi ne, %23, %c0_i32_17 : i32
    scf.if %24 {
      %c0_18 = arith.constant 0 : index
      %c0_19 = arith.constant 0 : index
      %25 = vector.load %arg10[%c0_18, %c0_19] : memref<16x128xf32, #tpu.memory_space<vmem>>, vector<16x128xf32>
      %c0_20 = arith.constant 0 : index
      %c0_21 = arith.constant 0 : index
      %26 = vector.load %arg6[%c0_20, %c0_21] : memref<1x128xf32, #tpu.memory_space<vmem>>, vector<1x128xf32>
      %27 = vector.broadcast %26 : vector<1x128xf32> to vector<16x128xf32>
      %28 = arith.addf %25, %27 : vector<16x128xf32>
      %29 = arith.addf %3, %28 : vector<16x128xf32>
      %cst_22 = arith.constant dense<0.000000e+00> : vector<16xf32>
      %30 = vector.multi_reduction <add>, %29, %cst_22 [1] : vector<16x128xf32> to vector<16xf32>
      %31 = vector.shape_cast %30 : vector<16xf32> to vector<16x1xf32>
      %cst_23 = arith.constant 3.125000e-02 : f32
      %32 = vector.broadcast %cst_23 : f32 to vector<16x1xf32>
      %33 = arith.mulf %31, %32 : vector<16x1xf32>
      %34 = vector.broadcast %33 : vector<16x1xf32> to vector<16x128xf32>
      %35 = arith.subf %29, %34 : vector<16x128xf32>
      %36 = arith.mulf %35, %35 : vector<16x128xf32>
      %cst_24 = arith.constant dense<0.000000e+00> : vector<16xf32>
      %37 = vector.multi_reduction <add>, %36, %cst_24 [1] : vector<16x128xf32> to vector<16xf32>
      %38 = vector.shape_cast %37 : vector<16xf32> to vector<16x1xf32>
      %cst_25 = arith.constant 9.600000e+01 : f32
      %39 = vector.broadcast %cst_25 : f32 to vector<16x1xf32>
      %40 = arith.mulf %39, %33 : vector<16x1xf32>
      %41 = arith.mulf %40, %33 : vector<16x1xf32>
      %42 = arith.subf %38, %41 : vector<16x1xf32>
      %cst_26 = arith.constant 3.125000e-02 : f32
      %43 = vector.broadcast %cst_26 : f32 to vector<16x1xf32>
      %44 = arith.mulf %42, %43 : vector<16x1xf32>
      %cst_27 = arith.constant 9.99999974E-6 : f32
      %45 = vector.broadcast %cst_27 : f32 to vector<16x1xf32>
      %46 = arith.addf %44, %45 : vector<16x1xf32>
      %47 = math.rsqrt %46 : vector<16x1xf32>
      %48 = vector.broadcast %47 : vector<16x1xf32> to vector<16x128xf32>
      %49 = arith.mulf %35, %48 : vector<16x128xf32>
      %c0_28 = arith.constant 0 : index
      %c0_29 = arith.constant 0 : index
      %50 = vector.load %arg7[%c0_28, %c0_29] : memref<1x128xf32, #tpu.memory_space<vmem>>, vector<1x128xf32>
      %51 = vector.broadcast %50 : vector<1x128xf32> to vector<16x128xf32>
      %52 = arith.mulf %49, %51 : vector<16x128xf32>
      %c0_30 = arith.constant 0 : index
      %c0_31 = arith.constant 0 : index
      %53 = vector.load %arg8[%c0_30, %c0_31] : memref<1x128xf32, #tpu.memory_space<vmem>>, vector<1x128xf32>
      %54 = vector.broadcast %53 : vector<1x128xf32> to vector<16x128xf32>
      %55 = arith.addf %52, %54 : vector<16x128xf32>
      %c0_32 = arith.constant 0 : index
      %c0_33 = arith.constant 0 : index
      %56 = vector.load %arg9[%c0_32, %c0_33] : memref<16x128xf32, #tpu.memory_space<vmem>>, vector<16x128xf32>
      tpu.vector_store %arg9[%c0_32, %c0_33], %55 {strides = array<i32>} : memref<16x128xf32, #tpu.memory_space<vmem>>, vector<16x128xf32>,
    } else {
    }
    return
  }
  func.func @transform_0(%arg0: i32, %arg1: i32) -> (i32, i32) {
    %c0_i32 = arith.constant 0 : i32
    %c0_i32_0 = arith.constant 0 : i32
    return %arg0, %c0_i32 : i32, i32
  }
  func.func @transform_1(%arg0: i32, %arg1: i32) -> (i32, i32) {
    %c0_i32 = arith.constant 0 : i32
    %c0_i32_0 = arith.constant 0 : i32
    return %c0_i32, %arg1 : i32, i32
  }
  func.func @transform_2(%arg0: i32, %arg1: i32) -> (i32, i32) {
    %c0_i32 = arith.constant 0 : i32
    %c0_i32_0 = arith.constant 0 : i32
    return %c0_i32, %arg1 : i32, i32
  }
  func.func @transform_3(%arg0: i32, %arg1: i32) -> (i32, i32) {
    %c0_i32 = arith.constant 0 : i32
    %c0_i32_0 = arith.constant 0 : i32
    return %arg1, %c0_i32 : i32, i32
  }
  func.func @transform_4(%arg0: i32, %arg1: i32) -> (i32, i32) {
    %c0_i32 = arith.constant 0 : i32
    %c0_i32_0 = arith.constant 0 : i32
    %c0_i32_1 = arith.constant 0 : i32
    return %c0_i32, %c0_i32_0 : i32, i32
  }
  func.func @transform_5(%arg0: i32, %arg1: i32) -> (i32, i32) {
    %c0_i32 = arith.constant 0 : i32
    %c0_i32_0 = arith.constant 0 : i32
    %c0_i32_1 = arith.constant 0 : i32
    return %c0_i32, %c0_i32_0 : i32, i32
  }
  func.func @transform_6(%arg0: i32, %arg1: i32) -> (i32, i32) {
    %c0_i32 = arith.constant 0 : i32
    %c0_i32_0 = arith.constant 0 : i32
    %c0_i32_1 = arith.constant 0 : i32
    return %c0_i32, %c0_i32_0 : i32, i32
  }
  func.func @transform_7(%arg0: i32, %arg1: i32) -> (i32, i32) {
    %c0_i32 = arith.constant 0 : i32
    %c0_i32_0 = arith.constant 0 : i32
    return %arg0, %c0_i32 : i32, i32
  }
}

</mosaic_0001>

<llo_original>
// kernel: tpu_custom_call.1
$region0: #{tpu_custom_call.1}
  #allocation0 [shape = 'u32[]', space=smem, size = 0x4, offset = 0x4, fixed_abs, tag = 'smem constant byte address 0x4 - core index']
  #allocation1 [shape = 'u32[144,128]{1,0:T(1,128)}', space=vmem, size = 0x12000, scoped, tag = 'internal scratch']
  #allocation2 [shape = 'f32[16,128]{1,0:T(8,128)}', space=vmem, size = 0x2000, scoped, tag = 'scratch operand']
  %s0 = inlined_call_operand.hbm [shape: f32[16,128], index: 0, kind: input, shape index: {}]
  %s1 = inlined_call_operand.hbm [shape: f32[128,128], index: 1, kind: input, shape index: {}]
  %s2 = inlined_call_operand.vmem [shape: f32[1,128], index: 2, kind: input, shape index: {}]
  %s3 = inlined_call_operand.hbm [shape: f32[128,128], index: 3, kind: input, shape index: {}]
  %s4 = inlined_call_operand.vmem [shape: f32[1,128], index: 4, kind: input, shape index: {}]
  %s5 = inlined_call_operand.vmem [shape: f32[1,128], index: 5, kind: input, shape index: {}]
  %s6 = inlined_call_operand.vmem [shape: f32[1,128], index: 6, kind: input, shape index: {}]
  %s7 = inlined_call_operand.hbm [shape: f32[16,128], index: 7, kind: output, shape index: {}]
  %s8 = sld [smem:[#allocation0]]
  $region58: #{tpu_custom_call.1} parent=0
    _
  %s10 = ssub.s32 1, %s8
  %s11 = scalar_select 0, %s10, %s8
  $region1: #{tpu_custom_call.1} parent=0
    #allocation3 [shape = 'u8[8192]{0}', space=vmem, size = 0x2000, scoped, tag = 'input window, operand 0, single buffered']
    #allocation4 [shape = 's32[1]{0}', space=sflag, size = 0x4, scoped, tag = 'scoped memory for tpu_custom_call.1']
    #allocation5 [shape = 's32[1]{0}', space=sflag, size = 0x4, scoped, tag = 'scoped memory for tpu_custom_call.1']
    #allocation6 [shape = 'u8[65536]{0}', space=vmem, size = 0x10000, scoped, tag = 'input window, operand 1, single buffered']
    #allocation7 [shape = 's32[1]{0}', space=sflag, size = 0x4, scoped, tag = 'scoped memory for tpu_custom_call.1']
    #allocation8 [shape = 'u8[65536]{0}', space=vmem, size = 0x10000, scoped, tag = 'input window, operand 3, single buffered']
    #allocation9 [shape = 'u8[8192]{0}', space=vmem, size = 0x2000, scoped, tag = 'output window, operand 0, single buffered']
    %12 = vsyncpa [#allocation4], 0
    %13 = vsyncpa [#allocation7], 0
    %14 = vsyncpa [#allocation5], 0
    // Predicated region
    $region2: #{tpu_custom_call.1} parent=1 // pred_check
      _
    $region3: #{tpu_custom_call.1} parent=1 // pred_check_branch
      %16 = sbr.rel (0) target = $region5
    $region4: #{tpu_custom_call.1} parent=1 // pred_region
      %s18 = ssub.s32 256, 256
      %19 = vsyncadd [#allocation4], %s18
      %s20 = sshll.u32 [#allocation3], 4
      %s21 = int_to_ptr.vmem [resolvable:$true] %s20
      %26 = dma.hbm_to_vmem [thread:$0]  %s0, 256, %s21, [#allocation4], 128, 128, 8
    $region5: #{tpu_custom_call.1} parent=1 // pred_fallthru
      _
    // Predicated region
    $region6: #{tpu_custom_call.1} parent=1 // pred_check
      _
    $region7: #{tpu_custom_call.1} parent=1 // pred_check_branch
      %28 = sbr.rel (0) target = $region9
    $region8: #{tpu_custom_call.1} parent=1 // pred_region
      %s30 = ssub.s32 2048, 2048
      %31 = vsyncadd [#allocation7], %s30
      %s32 = sshll.u32 [#allocation6], 4
      %s33 = int_to_ptr.vmem [resolvable:$true] %s32
      %38 = dma.hbm_to_vmem [thread:$0]  %s1, 2048, %s33, [#allocation7], 128, 128, 8
    $region9: #{tpu_custom_call.1} parent=1 // pred_fallthru
      _
    // Predicated region
    $region10: #{tpu_custom_call.1} parent=1 // pred_check
      _
    $region11: #{tpu_custom_call.1} parent=1 // pred_check_branch
      %40 = sbr.rel (0) target = $region13
    $region12: #{tpu_custom_call.1} parent=1 // pred_region
      _
    $region13: #{tpu_custom_call.1} parent=1 // pred_fallthru
      _
    // Predicated region
    $region14: #{tpu_custom_call.1} parent=1 // pred_check
      _
    $region15: #{tpu_custom_call.1} parent=1 // pred_check_branch
      %42 = sbr.rel (0) target = $region17
    $region16: #{tpu_custom_call.1} parent=1 // pred_region
      %s44 = ssub.s32 2048, 2048
      %45 = vsyncadd [#allocation7], %s44
      %s46 = sshll.u32 [#allocation8], 4
      %s47 = int_to_ptr.vmem [resolvable:$true] %s46
      %52 = dma.hbm_to_vmem [thread:$0]  %s3, 2048, %s47, [#allocation7], 128, 128, 8
    $region17: #{tpu_custom_call.1} parent=1 // pred_fallthru
      _
    // Predicated region
    $region18: #{tpu_custom_call.1} parent=1 // pred_check
      _
    $region19: #{tpu_custom_call.1} parent=1 // pred_check_branch
      %54 = sbr.rel (0) target = $region21
    $region20: #{tpu_custom_call.1} parent=1 // pred_region
      _
    $region21: #{tpu_custom_call.1} parent=1 // pred_fallthru
      _
    // Predicated region
    $region22: #{tpu_custom_call.1} parent=1 // pred_check
      _
    $region23: #{tpu_custom_call.1} parent=1 // pred_check_branch
      %56 = sbr.rel (0) target = $region25
    $region24: #{tpu_custom_call.1} parent=1 // pred_region
      _
    $region25: #{tpu_custom_call.1} parent=1 // pred_fallthru
      _
    // Predicated region
    $region26: #{tpu_custom_call.1} parent=1 // pred_check
      _
    $region27: #{tpu_custom_call.1} parent=1 // pred_check_branch
      %58 = sbr.rel (0) target = $region29
    $region28: #{tpu_custom_call.1} parent=1 // pred_region
      _
    $region29: #{tpu_custom_call.1} parent=1 // pred_fallthru
      _
    // Predicated region
    $region30: #{tpu_custom_call.1} parent=1 // pred_check
      _
    $region31: #{tpu_custom_call.1} parent=1 // pred_check_branch
      %60 = sbr.rel (0) target = $region33
    $region32: #{tpu_custom_call.1} parent=1 // pred_region
      %61 = dma.done [#allocation4], 256
    $region33: #{tpu_custom_call.1} parent=1 // pred_fallthru
      _
    // Predicated region
    $region34: #{tpu_custom_call.1} parent=1 // pred_check
      _
    $region35: #{tpu_custom_call.1} parent=1 // pred_check_branch
      %63 = sbr.rel (0) target = $region37
    $region36: #{tpu_custom_call.1} parent=1 // pred_region
      %64 = dma.done [#allocation7], 2048
    $region37: #{tpu_custom_call.1} parent=1 // pred_fallthru
      _
    // Predicated region
    $region38: #{tpu_custom_call.1} parent=1 // pred_check
      _
    $region39: #{tpu_custom_call.1} parent=1 // pred_check_branch
      %66 = sbr.rel (0) target = $region41
    $region40: #{tpu_custom_call.1} parent=1 // pred_region
      %67 = dma.done [#allocation7], 2048
    $region41: #{tpu_custom_call.1} parent=1 // pred_fallthru
      _
    %p68 = scmp.eq.s32.totalorder 0, 0
    // Predicated region
    $region42: #{tpu_custom_call.1} parent=1 // pred_check
      %p69 = pneg %p68
    $region43: #{tpu_custom_call.1} parent=1 // pred_check_branch
      %71 = sbr.rel (%p69) target = $region45
    $region44: #{tpu_custom_call.1} parent=1 // pred_region
      %72 = vst [vmem:[#allocation2] sm:$0xff] 0.0
      %73 = vst [vmem:[#allocation2 + $0x8] sm:$0xff] 0.0
    $region45: #{tpu_custom_call.1} parent=1 // pred_fallthru
      _
    %v74 = vld [vmem:[#allocation3] sm:$0xff]
    %v75 = vld [vmem:[#allocation3 + $0x8] sm:$0xff]
    %v76 = vld [vmem:[#allocation6] sm:$0xff]
    %v77 = vld [vmem:[#allocation6 + $0x8] sm:$0xff]
    %v78 = vld [vmem:[#allocation6 + $0x10] sm:$0xff]
    %v79 = vld [vmem:[#allocation6 + $0x18] sm:$0xff]
    %v80 = vld [vmem:[#allocation6 + $0x20] sm:$0xff]
    %v81 = vld [vmem:[#allocation6 + $0x28] sm:$0xff]
    %v82 = vld [vmem:[#allocation6 + $0x30] sm:$0xff]
    %v83 = vld [vmem:[#allocation6 + $0x38] sm:$0xff]
    %v84 = vld [vmem:[#allocation6 + $0x40] sm:$0xff]
    %v85 = vld [vmem:[#allocation6 + $0x48] sm:$0xff]
    %v86 = vld [vmem:[#allocation6 + $0x50] sm:$0xff]
    %v87 = vld [vmem:[#allocation6 + $0x58] sm:$0xff]
    %v88 = vld [vmem:[#allocation6 + $0x60] sm:$0xff]
    %v89 = vld [vmem:[#allocation6 + $0x68] sm:$0xff]
    %v90 = vld [vmem:[#allocation6 + $0x70] sm:$0xff]
    %v91 = vld [vmem:[#allocation6 + $0x78] sm:$0xff]
    %v92 = vld [vmem:[%s2] sm:$0x1]
    %v94 = vlaneseq
    %v95 = vshrl.u32 %v94, 7
    %v96 = vsub.s32 0, %v95
    %v97 = vrot.slane %v92, %v96
    %99 = vmatprep.subr.mxu0 0.0
    %100 = vmatpush1.msra.mxu0 %v76
    %101 = vmatprep.subr.mxu0 0.0
    %102 = vmatpush1.msra.mxu0 %v77
    %103 = vmatprep.subr.mxu0 0.0
    %104 = vmatpush1.msra.mxu0 %v78
    %105 = vmatprep.subr.mxu0 0.0
    %106 = vmatpush1.msra.mxu0 %v79
    %107 = vmatprep.subr.mxu0 0.0
    %108 = vmatpush1.msra.mxu0 %v80
    %109 = vmatprep.subr.mxu0 0.0
    %110 = vmatpush1.msra.mxu0 %v81
    %111 = vmatprep.subr.mxu0 0.0
    %112 = vmatpush1.msra.mxu0 %v82
    %113 = vmatprep.subr.mxu0 0.0
    %114 = vmatpush1.msra.mxu0 %v83
    %115 = vmatprep.subr.mxu0 0.0
    %116 = vmatpush1.msra.mxu0 %v84
    %117 = vmatprep.subr.mxu0 0.0
    %118 = vmatpush1.msra.mxu0 %v85
    %119 = vmatprep.subr.mxu0 0.0
    %120 = vmatpush1.msra.mxu0 %v86
    %121 = vmatprep.subr.mxu0 0.0
    %122 = vmatpush1.msra.mxu0 %v87
    %123 = vmatprep.subr.mxu0 0.0
    %124 = vmatpush1.msra.mxu0 %v88
    %125 = vmatprep.subr.mxu0 0.0
    %126 = vmatpush1.msra.mxu0 %v89
    %127 = vmatprep.subr.mxu0 0.0
    %128 = vmatpush1.msra.mxu0 %v90
    %129 = vmatprep.subr.mxu0 0.0
    %130 = vmatpush1.msra.mxu0 %v91
    %131 = vmatprep.subr.mxu0 0.0
    %132 = vmatpush1.msra.mxu0 0.0
    %133 = vmatprep.subr.mxu0 0.0
    %134 = vmatpush1.msra.mxu0 0.0
    %135 = vmatprep.subr.mxu0 0.0
    %136 = vmatpush1.msra.mxu0 0.0
    %137 = vmatprep.subr.mxu0 0.0
    %138 = vmatpush1.msra.mxu0 0.0
    %139 = vmatprep.subr.mxu0 0.0
    %140 = vmatpush1.msra.mxu0 0.0
    %141 = vmatprep.subr.mxu0 0.0
    %142 = vmatpush1.msra.mxu0 0.0
    %143 = vmatprep.subr.mxu0 0.0
    %144 = vmatpush1.msra.mxu0 0.0
    %145 = vmatprep.subr.mxu0 0.0
    %146 = vmatpush1.msra.mxu0 0.0
    %147 = vmatprep.subr.mxu0 0.0
    %148 = vmatpush1.msra.mxu0 0.0
    %149 = vmatprep.subr.mxu0 0.0
    %150 = vmatpush1.msra.mxu0 0.0
    %151 = vmatprep.subr.mxu0 0.0
    %152 = vmatpush1.msra.mxu0 0.0
    %153 = vmatprep.subr.mxu0 0.0
    %154 = vmatpush1.msra.mxu0 0.0
    %155 = vmatprep.subr.mxu0 0.0
    %156 = vmatpush1.msra.mxu0 0.0
    %157 = vmatprep.subr.mxu0 0.0
    %158 = vmatpush1.msra.mxu0 0.0
    %159 = vmatprep.subr.mxu0 0.0
    %160 = vmatpush1.msra.mxu0 0.0
    %161 = vmatprep.subr.mxu0 0.0
    %162 = vmatpush1.msra.mxu0 0.0
    %163 = vmatprep.mubr.f32.mxu0 0.0
    %164 = vmatmul.mubr.f32.gmra.mrb[0].mxu0 %v74
    %v165 = vpop.f32.mrb[0].mxu0
    %v166 = vadd.f32 %v97, %v165
    %v167 = vpop.f32.mrb[0].mxu0
    %168 = vmatprep.mubr.f32.mxu0 0.0
    %169 = vmatmul.mubr.f32.gmra.mrb[0].mxu0 %v75
    %v170 = vpop.f32.mrb[0].mxu0
    %v171 = vadd.f32 %v97, %v170
    %v172 = vpop.f32.mrb[0].mxu0
    %173 = vdwg.mxu0
    %v174 = vmul.f32 %v166, 0.5
    %v175 = vmul.f32 %v171, 0.5
    %v176 = vmul.f32 %v166, 0.70710677
    %v177 = vmul.f32 %v171, 0.70710677
    %v178 = verf.f32.pop %v176
    %v179 = verf.f32.pop %v177
    %v180 = vadd.f32 %v178, 1.0
    %v181 = vadd.f32 %v179, 1.0
    %v182 = vmul.f32 %v174, %v180
    %v183 = vmul.f32 %v175, %v181
    %v184 = vld [vmem:[#allocation2] sm:$0xff]
    %v185 = vld [vmem:[#allocation2 + $0x8] sm:$0xff]
    %v186 = vld [vmem:[#allocation8] sm:$0xff]
    %v187 = vld [vmem:[#allocation8 + $0x8] sm:$0xff]
    %v188 = vld [vmem:[#allocation8 + $0x10] sm:$0xff]
    %v189 = vld [vmem:[#allocation8 + $0x18] sm:$0xff]
    %v190 = vld [vmem:[#allocation8 + $0x20] sm:$0xff]
    %v191 = vld [vmem:[#allocation8 + $0x28] sm:$0xff]
    %v192 = vld [vmem:[#allocation8 + $0x30] sm:$0xff]
    %v193 = vld [vmem:[#allocation8 + $0x38] sm:$0xff]
    %v194 = vld [vmem:[#allocation8 + $0x40] sm:$0xff]
    %v195 = vld [vmem:[#allocation8 + $0x48] sm:$0xff]
    %v196 = vld [vmem:[#allocation8 + $0x50] sm:$0xff]
    %v197 = vld [vmem:[#allocation8 + $0x58] sm:$0xff]
    %v198 = vld [vmem:[#allocation8 + $0x60] sm:$0xff]
    %v199 = vld [vmem:[#allocation8 + $0x68] sm:$0xff]
    %v200 = vld [vmem:[#allocation8 + $0x70] sm:$0xff]
    %v201 = vld [vmem:[#allocation8 + $0x78] sm:$0xff]
    %202 = vmatprep.subr.mxu0 0.0
    %203 = vmatpush1.msra.mxu0 %v186
    %204 = vmatprep.subr.mxu0 0.0
    %205 = vmatpush1.msra.mxu0 %v187
    %206 = vmatprep.subr.mxu0 0.0
    %207 = vmatpush1.msra.mxu0 %v188
    %208 = vmatprep.subr.mxu0 0.0
    %209 = vmatpush1.msra.mxu0 %v189
    %210 = vmatprep.subr.mxu0 0.0
    %211 = vmatpush1.msra.mxu0 %v190
    %212 = vmatprep.subr.mxu0 0.0
    %213 = vmatpush1.msra.mxu0 %v191
    %214 = vmatprep.subr.mxu0 0.0
    %215 = vmatpush1.msra.mxu0 %v192
    %216 = vmatprep.subr.mxu0 0.0
    %217 = vmatpush1.msra.mxu0 %v193
    %218 = vmatprep.subr.mxu0 0.0
    %219 = vmatpush1.msra.mxu0 %v194
    %220 = vmatprep.subr.mxu0 0.0
    %221 = vmatpush1.msra.mxu0 %v195
    %222 = vmatprep.subr.mxu0 0.0
    %223 = vmatpush1.msra.mxu0 %v196
    %224 = vmatprep.subr.mxu0 0.0
    %225 = vmatpush1.msra.mxu0 %v197
    %226 = vmatprep.subr.mxu0 0.0
    %227 = vmatpush1.msra.mxu0 %v198
    %228 = vmatprep.subr.mxu0 0.0
    %229 = vmatpush1.msra.mxu0 %v199
    %230 = vmatprep.subr.mxu0 0.0
    %231 = vmatpush1.msra.mxu0 %v200
    %232 = vmatprep.subr.mxu0 0.0
    %233 = vmatpush1.msra.mxu0 %v201
    %234 = vmatprep.subr.mxu0 0.0
    %235 = vmatpush1.msra.mxu0 0.0
    %236 = vmatprep.subr.mxu0 0.0
    %237 = vmatpush1.msra.mxu0 0.0
    %238 = vmatprep.subr.mxu0 0.0
    %239 = vmatpush1.msra.mxu0 0.0
    %240 = vmatprep.subr.mxu0 0.0
    %241 = vmatpush1.msra.mxu0 0.0
    %242 = vmatprep.subr.mxu0 0.0
    %243 = vmatpush1.msra.mxu0 0.0
    %244 = vmatprep.subr.mxu0 0.0
    %245 = vmatpush1.msra.mxu0 0.0
    %246 = vmatprep.subr.mxu0 0.0
    %247 = vmatpush1.msra.mxu0 0.0
    %248 = vmatprep.subr.mxu0 0.0
    %249 = vmatpush1.msra.mxu0 0.0
    %250 = vmatprep.subr.mxu0 0.0
    %251 = vmatpush1.msra.mxu0 0.0
    %252 = vmatprep.subr.mxu0 0.0
    %253 = vmatpush1.msra.mxu0 0.0
    %254 = vmatprep.subr.mxu0 0.0
    %255 = vmatpush1.msra.mxu0 0.0
    %256 = vmatprep.subr.mxu0 0.0
    %257 = vmatpush1.msra.mxu0 0.0
    %258 = vmatprep.subr.mxu0 0.0
    %259 = vmatpush1.msra.mxu0 0.0
    %260 = vmatprep.subr.mxu0 0.0
    %261 = vmatpush1.msra.mxu0 0.0
    %262 = vmatprep.subr.mxu0 0.0
    %263 = vmatpush1.msra.mxu0 0.0
    %264 = vmatprep.subr.mxu0 0.0
    %265 = vmatpush1.msra.mxu0 0.0
    %266 = vmatprep.mubr.f32.mxu0 0.0
    %267 = vmatmul.mubr.f32.gmra.mrb[0].mxu0 %v182
    %v268 = vpop.f32.mrb[0].mxu0
    %v269 = vadd.f32 0.0, %v268
    %v270 = vpop.f32.mrb[0].mxu0
    %271 = vmatprep.mubr.f32.mxu0 0.0
    %272 = vmatmul.mubr.f32.gmra.mrb[0].mxu0 %v183
    %v273 = vpop.f32.mrb[0].mxu0
    %v274 = vadd.f32 0.0, %v273
    %v275 = vpop.f32.mrb[0].mxu0
    %276 = vdwg.mxu0
    %v277 = vadd.f32 %v184, %v269
    %v278 = vadd.f32 %v185, %v274
    %279 = vst [vmem:[#allocation2] sm:$0xff] %v277
    %280 = vst [vmem:[#allocation2 + $0x8] sm:$0xff] %v278
    // Predicated region
    $region46: #{tpu_custom_call.1} parent=1 // pred_check
      %p281 = pneg %p68
    $region47: #{tpu_custom_call.1} parent=1 // pred_check_branch
      %283 = sbr.rel (%p281) target = $region49
    $region48: #{tpu_custom_call.1} parent=1 // pred_region
      %v284 = vld [vmem:[#allocation2] sm:$0xff]
      %v285 = vld [vmem:[#allocation2 + $0x8] sm:$0xff]
      %v286 = vld [vmem:[%s4] sm:$0x1]
      %v288 = vlaneseq
      %v289 = vshrl.u32 %v288, 7
      %v290 = vsub.s32 0, %v289
      %v291 = vrot.slane %v286, %v290
      %v293 = vadd.f32 %v284, %v291
      %v294 = vadd.f32 %v285, %v291
      %v295 = vadd.f32 %v74, %v293
      %v296 = vadd.f32 %v75, %v294
      %297 = vadd.xlane.f32.xlu0 %v295
      %v298 = vpop.xlane.xlu0 %297
      %299 = vadd.xlane.f32.xlu0 %v296
      %v300 = vpop.xlane.xlu0 %299
      %v301 = vmul.f32 %v298, 0.03125
      %v302 = vmul.f32 %v300, 0.03125
      %v303 = vsub.f32 %v295, %v301
      %v304 = vsub.f32 %v296, %v302
      %v305 = vmul.f32 %v303, %v303
      %v306 = vmul.f32 %v304, %v304
      %307 = vadd.xlane.f32.xlu0 %v305
      %v308 = vpop.xlane.xlu0 %307
      %309 = vadd.xlane.f32.xlu0 %v306
      %v310 = vpop.xlane.xlu0 %309
      %v311 = vmul.f32 %v301, 96.0
      %v312 = vmul.f32 %v302, 96.0
      %v313 = vmul.f32 %v311, %v301
      %v314 = vmul.f32 %v312, %v302
      %v315 = vsub.f32 %v308, %v313
      %v316 = vsub.f32 %v310, %v314
      %v317 = vmul.f32 %v315, 0.03125
      %v318 = vmul.f32 %v316, 0.03125
      %v319 = vadd.f32 %v317, 1e-05
      %v320 = vadd.f32 %v318, 1e-05
      %v321 = vrsqrt.pop %v319
      %v322 = vrsqrt.pop %v320
      %v323 = vmul.f32 %v303, %v321
      %v324 = vmul.f32 %v304, %v322
      %v325 = vld [vmem:[%s5] sm:$0x1]
      %v327 = vlaneseq
      %v328 = vshrl.u32 %v327, 7
      %v329 = vsub.s32 0, %v328
      %v330 = vrot.slane %v325, %v329
      %v332 = vmul.f32 %v323, %v330
      %v333 = vmul.f32 %v324, %v330
      %v334 = vld [vmem:[%s6] sm:$0x1]
      %v336 = vlaneseq
      %v337 = vshrl.u32 %v336, 7
      %v338 = vsub.s32 0, %v337
      %v339 = vrot.slane %v334, %v338
      %v341 = vadd.f32 %v332, %v339
      %v342 = vadd.f32 %v333, %v339
      %343 = vst [vmem:[#allocation9] sm:$0xff] %v341
      %344 = vst [vmem:[#allocation9 + $0x8] sm:$0xff] %v342
    $region49: #{tpu_custom_call.1} parent=1 // pred_fallthru
      _
    // Predicated region
    $region50: #{tpu_custom_call.1} parent=1 // pred_check
      _
    $region51: #{tpu_custom_call.1} parent=1 // pred_check_branch
      %346 = sbr.rel (0) target = $region53
    $region52: #{tpu_custom_call.1} parent=1 // pred_region
      %s348 = ssub.s32 256, 256
      %349 = vsyncadd [#allocation5], %s348
      %s350 = sshll.u32 [#allocation9], 4
      %s351 = int_to_ptr.vmem [resolvable:$true] %s350
      %356 = dma.vmem_to_hbm [thread:$0]  %s351, 256, %s7, [#allocation5], 128, 128, 8
    $region53: #{tpu_custom_call.1} parent=1 // pred_fallthru
      _
    // Predicated region
    $region54: #{tpu_custom_call.1} parent=1 // pred_check
      _
    $region55: #{tpu_custom_call.1} parent=1 // pred_check_branch
      %358 = sbr.rel (0) target = $region57
    $region56: #{tpu_custom_call.1} parent=1 // pred_region
      %359 = dma.done [#allocation5], 256
    $region57: #{tpu_custom_call.1} parent=1 // pred_fallthru
      _
    %360 = vsyncpa [#allocation4], 1
    %361 = vsyncpa [#allocation7], 1
    %362 = vsyncpa [#allocation5], 1

</llo_original>
